<compile_context>
chip_gen: v5e
topology: v5e:2x2
jax: 0.10.0
libtpu: 0.0.40
codegen_flags: <defaults>
</compile_context>

<pallas_src>
import functools

import numpy as np
import jax
import jax.numpy as jnp
from jax.experimental import pallas as pl
from jax.experimental.pallas import tpu as pltpu

PI = float(np.pi)

LANE = 128
SUBLANE = 8
MAX_BLOCK_ROWS = 2048            # (2,3,2048,128) f32 tile = 6 MiB; x2 buffers = 12 MiB
VMEM_LIMIT_BYTES = 48 * 1024 * 1024


def _num_core_splits():
    # 2 TensorCores per chip only on v7x-class parts; on single-TC chips the
    # leading grid axis is a plain sequential loop, so keep it at 1 there.
    try:
        kind = jax.devices()[0].device_kind.lower()
    except Exception:
        return 1
    return 2 if ("v7" in kind or "tpu7" in kind) else 1


def _loss_kernel(packed_ref, sum_ref, acc_ref, *, block_rows):
    # packed_ref : (2, 3, block_rows, 128) f32 VMEM
    #              [0] = prediction planes (x, y, z), [1] = label planes
    # sum_ref    : (1, 1) f32 SMEM  -- this core-split's partial sum
    # acc_ref    : (8, 128) f32 VMEM partial-sum accumulator
    i = pl.program_id(1)
    n_steps = pl.num_programs(1)

    @pl.when(i == 0)
    def _():
        acc_ref[...] = jnp.zeros_like(acc_ref)

    ox = packed_ref[0, 0]
    oy = packed_ref[0, 1]
    oz = packed_ref[0, 2]
    lx = packed_ref[1, 0]
    ly = packed_ref[1, 1]
    lz = packed_ref[1, 2]

    # Great-circle (Vincenty) distance == atan2(||a x b||, a . b); it is scale
    # invariant in `a`, so the raw prediction is used unnormalized, and the
    # labels are contractually unit-norm so they are used directly.
    # TODO(synk): if v5e bundle dumps show VMEM spills of the (block_rows,128)
    # temporaries, strip-mine this body with an inner lax.fori_loop(unroll=True).
    dot = ox * lx + oy * ly + oz * lz
    cx = oy * lz - oz * ly
    cy = oz * lx - ox * lz
    cz = ox * ly - oy * lx
    cross = jnp.sqrt(cx * cx + cy * cy + cz * cz)
    # Zero-padded tail rows give atan2(0, 0) == 0 -> no contribution to the
    # sum, so no explicit tail mask is required.
    loss = jnp.arctan2(cross, dot)

    # vreg-wise partial accumulation (pure VPU adds; one XLU reduce at the end)
    acc_ref[...] += loss.reshape(block_rows // SUBLANE, SUBLANE, LANE).sum(axis=0)

    @pl.when(i == n_steps - 1)
    def _():
        sum_ref[0, 0] = jnp.sum(acc_ref[...])


def _pack_planes(outputs, labels, rows_total):
    # Single fused pack of BOTH arrays: (N, C>=3) x 2 -> (2, 3, rows_total, 128)
    # component-major, lane-dense planes, zero padded.
    o3 = jnp.asarray(outputs, jnp.float32)[:, :3]
    l3 = jnp.asarray(labels, jnp.float32)[:, :3]
    x = jnp.stack([o3, l3], axis=0)                          # (2, N, 3)
    pad = rows_total * LANE - x.shape[1]
    xt = jnp.pad(jnp.swapaxes(x, 1, 2), ((0, 0), (0, 0), (0, pad)))
    return xt.reshape(2, 3, rows_total, LANE)


@functools.partial(jax.jit, static_argnames=("core_splits",))
def _loss_impl(outputs, labels, core_splits):
    n = outputs.shape[0]

    rows_min = max(SUBLANE, pl.cdiv(n, LANE))
    rows_min = pl.cdiv(rows_min, SUBLANE) * SUBLANE           # multiple of 8
    block_rows = min(MAX_BLOCK_ROWS, rows_min)                # multiple of 8
    super_block = core_splits * block_rows
    rows_total = pl.cdiv(rows_min, super_block) * super_block
    steps = rows_total // super_block

    packed = _pack_planes(outputs, labels, rows_total)

    kernel = functools.partial(_loss_kernel, block_rows=block_rows)

    partials = pl.pallas_call(
        kernel,
        out_shape=jax.ShapeDtypeStruct((core_splits, 1), jnp.float32),
        grid_spec=pltpu.PrefetchScalarGridSpec(
            num_scalar_prefetch=0,
            grid=(core_splits, steps),
            in_specs=[
                pl.BlockSpec((2, 3, block_rows, LANE),
                             lambda c, i: (0, 0, c * steps + i, 0)),
            ],
            out_specs=pl.BlockSpec((1, 1), lambda c, i: (c, 0),
                                   memory_space=pltpu.MemorySpace.SMEM),
            scratch_shapes=[pltpu.VMEM((SUBLANE, LANE), jnp.float32)],
        ),
        compiler_params=pltpu.CompilerParams(
            dimension_semantics=("parallel", "arbitrary"),
            vmem_limit_bytes=VMEM_LIMIT_BYTES),
    )(packed)

    return jnp.sum(partials) / jnp.float32(n)


def cartesian_angular_distance_loss(outputs, labels):
    """JAX/Pallas equivalent of CartesionAngularDistanceLoss.forward.

    Assumes labels are unit-norm direction vectors (the PyTorch reference's
    acos(labels[:, 2]) already requires that).
    """
    return _loss_impl(outputs, labels, _num_core_splits())


def _ref_loss(outputs, labels):
    # pure-JAX reference mirroring the PyTorch code exactly
    ox, oy, oz = outputs[:, 0], outputs[:, 1], outputs[:, 2]
    lx, ly, lz = labels[:, 0], labels[:, 1], labels[:, 2]
    theta = jnp.arccos(oz / jnp.sqrt(oz**2 + oy**2 + ox**2))
    out_dec = (PI - theta) - PI / 2.0
    out_ra = PI + jnp.arctan2(oy, ox)
    theta = jnp.arccos(lz)
    lab_dec = (PI - theta) - PI / 2.0
    lab_ra = PI + jnp.arctan2(ly, lx)
    c1, c2 = jnp.cos(out_dec), jnp.cos(lab_dec)
    s1, s2 = jnp.sin(out_dec), jnp.sin(lab_dec)
    sd, cd = jnp.sin(lab_ra - out_ra), jnp.cos(lab_ra - out_ra)
    loss = jnp.arctan2(jnp.hypot(c2 * sd, c1 * s2 - s1 * c2 * cd),
                       s1 * s2 + c1 * c2 * cd)
    return loss.mean()


if __name__ == "__main__":
    key = jax.random.PRNGKey(0)
    k1, k2, k3, k4 = jax.random.split(key, 4)

    # small test consistent with the module: (N, 3) predictions + unit labels
    N = 8
    outputs = jax.random.normal(k1, (N, 3), dtype=jnp.float32)
    labels_raw = jax.random.normal(k2, (N, 3), dtype=jnp.float32)
    labels = labels_raw / jnp.linalg.norm(labels_raw, axis=1, keepdims=True)

    loss = cartesian_angular_distance_loss(outputs, labels)
    jax.block_until_ready(loss)
    ref = _ref_loss(outputs, labels)
    assert jnp.allclose(loss, ref, atol=1e-5, rtol=1e-4), (loss, ref)

    # second shape (non-multiple of 128) to exercise the padding path
    N2 = 1037
    outputs2 = jax.random.normal(k3, (N2, 3), dtype=jnp.float32)
    labels2_raw = jax.random.normal(k4, (N2, 3), dtype=jnp.float32)
    labels2 = labels2_raw / jnp.linalg.norm(labels2_raw, axis=1, keepdims=True)

    loss2 = cartesian_angular_distance_loss(outputs2, labels2)
    jax.block_until_ready(loss2)
    ref2 = _ref_loss(outputs2, labels2)
    assert jnp.allclose(loss2, ref2, atol=1e-5, rtol=1e-4), (loss2, ref2)

    print("KERNEL_OK")
</pallas_src>

<mosaic_0001>
module attributes {stable_mosaic.version = 11 : i64} {
  func.func @_loss_kernel(%arg0: i32, %arg1: i32, %arg2: memref<2x3x8x128xf32, #tpu.memory_space<vmem>>, %arg3: memref<1x1xf32, #tpu.memory_space<smem>>, %arg4: memref<8x128xf32, #tpu.memory_space<vmem>>) attributes {dimension_semantics = [#tpu.dimension_semantics<parallel>, #tpu.dimension_semantics<arbitrary>], iteration_bounds = array<i64: 1, 1>, scalar_prefetch = 0 : i64, scratch_operands = 1 : i64, tpu.core_type = #tpu.core_type<tc>, window_params = [{transform_indices = @transform_0, window_bounds = array<i64: 2, 3, 8, 128>}, {transform_indices = @transform_1, window_bounds = array<i64: 1, 1>}]} {
    %c0_i32 = arith.constant 0 : i32
    %0 = arith.cmpi eq, %arg1, %c0_i32 : i32
    %1 = arith.extui %0 : i1 to i32
    %c0_i32_0 = arith.constant 0 : i32
    %2 = arith.cmpi ne, %1, %c0_i32_0 : i32
    scf.if %2 {
      %cst_28 = arith.constant 0.000000e+00 : f32
      %44 = vector.broadcast %cst_28 : f32 to vector<8x128xf32>
      %c0_29 = arith.constant 0 : index
      %c0_30 = arith.constant 0 : index
      %45 = vector.load %arg4[%c0_29, %c0_30] : memref<8x128xf32, #tpu.memory_space<vmem>>, vector<8x128xf32>
      tpu.vector_store %arg4[%c0_29, %c0_30], %44 {strides = array<i32>} : memref<8x128xf32, #tpu.memory_space<vmem>>, vector<8x128xf32>,
    } else {
    }
    %c0 = arith.constant 0 : index
    %c0_1 = arith.constant 0 : index
    %c0_2 = arith.constant 0 : index
    %c0_3 = arith.constant 0 : index
    %3 = vector.load %arg2[%c0, %c0_1, %c0_2, %c0_3] : memref<2x3x8x128xf32, #tpu.memory_space<vmem>>, vector<1x1x8x128xf32>
    %4 = vector.shape_cast %3 : vector<1x1x8x128xf32> to vector<8x128xf32>
    %c0_4 = arith.constant 0 : index
    %c1 = arith.constant 1 : index
    %c0_5 = arith.constant 0 : index
    %c0_6 = arith.constant 0 : index
    %5 = vector.load %arg2[%c0_4, %c1, %c0_5, %c0_6] : memref<2x3x8x128xf32, #tpu.memory_space<vmem>>, vector<1x1x8x128xf32>
    %6 = vector.shape_cast %5 : vector<1x1x8x128xf32> to vector<8x128xf32>
    %c0_7 = arith.constant 0 : index
    %c2 = arith.constant 2 : index
    %c0_8 = arith.constant 0 : index
    %c0_9 = arith.constant 0 : index
    %7 = vector.load %arg2[%c0_7, %c2, %c0_8, %c0_9] : memref<2x3x8x128xf32, #tpu.memory_space<vmem>>, vector<1x1x8x128xf32>
    %8 = vector.shape_cast %7 : vector<1x1x8x128xf32> to vector<8x128xf32>
    %c1_10 = arith.constant 1 : index
    %c0_11 = arith.constant 0 : index
    %c0_12 = arith.constant 0 : index
    %c0_13 = arith.constant 0 : index
    %9 = vector.load %arg2[%c1_10, %c0_11, %c0_12, %c0_13] : memref<2x3x8x128xf32, #tpu.memory_space<vmem>>, vector<1x1x8x128xf32>
    %10 = vector.shape_cast %9 : vector<1x1x8x128xf32> to vector<8x128xf32>
    %c1_14 = arith.constant 1 : index
    %c1_15 = arith.constant 1 : index
    %c0_16 = arith.constant 0 : index
    %c0_17 = arith.constant 0 : index
    %11 = vector.load %arg2[%c1_14, %c1_15, %c0_16, %c0_17] : memref<2x3x8x128xf32, #tpu.memory_space<vmem>>, vector<1x1x8x128xf32>
    %12 = vector.shape_cast %11 : vector<1x1x8x128xf32> to vector<8x128xf32>
    %c1_18 = arith.constant 1 : index
    %c2_19 = arith.constant 2 : index
    %c0_20 = arith.constant 0 : index
    %c0_21 = arith.constant 0 : index
    %13 = vector.load %arg2[%c1_18, %c2_19, %c0_20, %c0_21] : memref<2x3x8x128xf32, #tpu.memory_space<vmem>>, vector<1x1x8x128xf32>
    %14 = vector.shape_cast %13 : vector<1x1x8x128xf32> to vector<8x128xf32>
    %15 = arith.mulf %4, %10 : vector<8x128xf32>
    %16 = arith.mulf %6, %12 : vector<8x128xf32>
    %17 = arith.addf %15, %16 : vector<8x128xf32>
    %18 = arith.mulf %8, %14 : vector<8x128xf32>
    %19 = arith.addf %17, %18 : vector<8x128xf32>
    %20 = arith.mulf %6, %14 : vector<8x128xf32>
    %21 = arith.mulf %8, %12 : vector<8x128xf32>
    %22 = arith.subf %20, %21 : vector<8x128xf32>
    %23 = arith.mulf %8, %10 : vector<8x128xf32>
    %24 = arith.mulf %4, %14 : vector<8x128xf32>
    %25 = arith.subf %23, %24 : vector<8x128xf32>
    %26 = arith.mulf %4, %12 : vector<8x128xf32>
    %27 = arith.mulf %6, %10 : vector<8x128xf32>
    %28 = arith.subf %26, %27 : vector<8x128xf32>
    %29 = arith.mulf %22, %22 : vector<8x128xf32>
    %30 = arith.mulf %25, %25 : vector<8x128xf32>
    %31 = arith.addf %29, %30 : vector<8x128xf32>
    %32 = arith.mulf %28, %28 : vector<8x128xf32>
    %33 = arith.addf %31, %32 : vector<8x128xf32>
    %34 = math.sqrt %33 : vector<8x128xf32>
    %35 = math.atan2 %34, %19 : vector<8x128xf32>
    %c0_22 = arith.constant 0 : index
    %c0_23 = arith.constant 0 : index
    %36 = vector.load %arg4[%c0_22, %c0_23] : memref<8x128xf32, #tpu.memory_space<vmem>>, vector<8x128xf32>
    %37 = vector.shape_cast %35 : vector<8x128xf32> to vector<1x8x128xf32>
    %cst = arith.constant dense<0.000000e+00> : vector<8x128xf32>
    %38 = vector.multi_reduction <add>, %37, %cst [0] : vector<1x8x128xf32> to vector<8x128xf32>
    %39 = arith.addf %36, %38 : vector<8x128xf32>
    %c0_24 = arith.constant 0 : index
    %c0_25 = arith.constant 0 : index
    %40 = vector.load %arg4[%c0_24, %c0_25] : memref<8x128xf32, #tpu.memory_space<vmem>>, vector<8x128xf32>
    tpu.vector_store %arg4[%c0_24, %c0_25], %39 {strides = array<i32>} : memref<8x128xf32, #tpu.memory_space<vmem>>, vector<8x128xf32>,
    %c0_i32_26 = arith.constant 0 : i32
    %41 = arith.cmpi eq, %arg1, %c0_i32_26 : i32
    %42 = arith.extui %41 : i1 to i32
    %c0_i32_27 = arith.constant 0 : i32
    %43 = arith.cmpi ne, %42, %c0_i32_27 : i32
    scf.if %43 {
      %c0_28 = arith.constant 0 : index
      %c0_29 = arith.constant 0 : index
      %44 = vector.load %arg4[%c0_28, %c0_29] : memref<8x128xf32, #tpu.memory_space<vmem>>, vector<8x128xf32>
      %45 = vector.shape_cast %44 : vector<8x128xf32> to vector<1x8x128xf32>
      %cst_30 = arith.constant dense<0.000000e+00> : vector<1xf32>
      %46 = vector.multi_reduction <add>, %45, %cst_30 [1, 2] : vector<1x8x128xf32> to vector<1xf32>
      %47 = vector.shape_cast %46 : vector<1xf32> to vector<1x1x1xf32>
      %48 = vector.extract %47[0, 0, 0] : f32 from vector<1x1x1xf32>
      %c0_31 = arith.constant 0 : index
      %c0_32 = arith.constant 0 : index
      %49 = memref.load %arg3[%c0_31, %c0_32] : memref<1x1xf32, #tpu.memory_space<smem>>
      memref.store %48, %arg3[%c0_31, %c0_32] : memref<1x1xf32, #tpu.memory_space<smem>>
    } else {
    }
    return
  }
  func.func @transform_0(%arg0: i32, %arg1: i32) -> (i32, i32, i32, i32) {
    %c1_i32 = arith.constant 1 : i32
    %0 = arith.muli %arg0, %c1_i32 : i32
    %1 = arith.addi %0, %arg1 : i32
    %c0_i32 = arith.constant 0 : i32
    %c0_i32_0 = arith.constant 0 : i32
    %c0_i32_1 = arith.constant 0 : i32
    %c0_i32_2 = arith.constant 0 : i32
    return %c0_i32, %c0_i32_0, %1, %c0_i32_1 : i32, i32, i32, i32
  }
  func.func @transform_1(%arg0: i32, %arg1: i32) -> (i32, i32) {
    %c0_i32 = arith.constant 0 : i32
    %c0_i32_0 = arith.constant 0 : i32
    return %arg0, %c0_i32 : i32, i32
  }
}

</mosaic_0001>

<llo_original>
// kernel: _loss_impl.1
$region0: #{_loss_impl.1}
  #allocation0 [shape = 'u32[]', space=smem, size = 0x4, offset = 0x4, fixed_abs, tag = 'smem constant byte address 0x4 - core index']
  #allocation1 [shape = 'u32[72,128]{1,0:T(1,128)}', space=vmem, size = 0x9000, scoped, tag = 'internal scratch']
  #allocation2 [shape = 'f32[8,128]{1,0:T(8,128)}', space=vmem, size = 0x1000, scoped, tag = 'scratch operand']
  %s0 = inlined_call_operand.vmem [shape: f32[2,3,8,128], index: 0, kind: input, shape index: {}]
  %s1 = inlined_call_operand.hbm [shape: f32[1,1], index: 1, kind: output, shape index: {}]
  %s2 = sld [smem:[#allocation0]]
  $region22: #{_loss_impl.1} parent=0
    _
  %s4 = ssub.s32 1, %s2
  %s5 = scalar_select 0, %s4, %s2
  $region1: #{_loss_impl.1} parent=0
    #allocation3 [shape = 'u8[512]{0}', space=smem, size = 0x200, scoped, tag = 'output window, operand 0, single buffered']
    #allocation4 [shape = 's32[1]{0}', space=sflag, size = 0x4, scoped, tag = 'scoped memory for _loss_impl.1']
    %6 = vsyncpa [#allocation4], 0
    // Predicated region
    $region2: #{_loss_impl.1} parent=1 // pred_check
      _
    $region3: #{_loss_impl.1} parent=1 // pred_check_branch
      %8 = sbr.rel (0) target = $region5
    $region4: #{_loss_impl.1} parent=1 // pred_region
      %s9 = sadd.s32 0, 0
      %p10 = scmp.lt.s32.totalorder %s9, 0
      %s11 = scalar_select %p10, %s9, 0
      %s12 = smul.addr %s11, 8
      %s13 = scalar_lea.vmem %s0, %s12
      %s14 = sadd.s32 0, 0
    $region5: #{_loss_impl.1} parent=1 // pred_fallthru
      _
    %s15 = sadd.s32 0, 0
    %p16 = scmp.lt.s32.totalorder %s15, 0
    %s17 = scalar_select %p16, %s15, 0
    %s18 = smul.addr %s17, 8
    %s19 = scalar_lea.vmem %s0, %s18
    %s20 = sadd.s32 0, 0
    %p21 = scmp.lt.s32.totalorder %s20, 0
    %s22 = scalar_select %p21, %s20, 0
    %s23 = smul.addr %s22, 8
    %s24 = scalar_lea.vmem %s0, %s23
    %s25 = sadd.s32 0, 0
    %p26 = scmp.eq.s32.totalorder 0, 0
    // Predicated region
    $region6: #{_loss_impl.1} parent=1 // pred_check
      %p27 = pneg %p26
    $region7: #{_loss_impl.1} parent=1 // pred_check_branch
      %29 = sbr.rel (%p27) target = $region9
    $region8: #{_loss_impl.1} parent=1 // pred_region
      %30 = vst [vmem:[#allocation2] sm:$0xff] 0.0
    $region9: #{_loss_impl.1} parent=1 // pred_fallthru
      _
    %v31 = vld [vmem:[%s24] sm:$0xff]
    %s32 = scalar_lea.vmem %s24, 8
    %v33 = vld [vmem:[%s32] sm:$0xff]
    %s34 = scalar_lea.vmem %s24, 16
    %v35 = vld [vmem:[%s34] sm:$0xff]
    %s36 = scalar_lea.vmem %s24, 24
    %v37 = vld [vmem:[%s36] sm:$0xff]
    %s38 = scalar_lea.vmem %s24, 32
    %v39 = vld [vmem:[%s38] sm:$0xff]
    %s40 = scalar_lea.vmem %s24, 40
    %v41 = vld [vmem:[%s40] sm:$0xff]
    %v42 = vmul.f32 %v31, %v37
    %v43 = vmul.f32 %v33, %v39
    %v44 = vadd.f32 %v42, %v43
    %v45 = vmul.f32 %v35, %v41
    %v46 = vadd.f32 %v44, %v45
    %v47 = vmul.f32 %v33, %v41
    %v48 = vmul.f32 %v35, %v39
    %v49 = vsub.f32 %v47, %v48
    %v50 = vmul.f32 %v35, %v37
    %v51 = vmul.f32 %v31, %v41
    %v52 = vsub.f32 %v50, %v51
    %v53 = vmul.f32 %v31, %v39
    %v54 = vmul.f32 %v33, %v37
    %v55 = vsub.f32 %v53, %v54
    %v56 = vmul.f32 %v49, %v49
    %v57 = vmul.f32 %v52, %v52
    %v58 = vadd.f32 %v56, %v57
    %v59 = vmul.f32 %v55, %v55
    %v60 = vadd.f32 %v58, %v59
    %v61 = vrsqrt.pop %v60
    %v62 = vmul.f32 %v61, %v60
    %v63 = vmul.f32 %v62, %v61
    %v64 = vmul.f32 0.5, %v63
    %v65 = vsub.f32 1.5, %v64
    %v66 = vmul.f32 %v61, %v65
    %v67 = vmul.f32 %v60, %v66
    %vm68 = vcmp.eq.f32.partialorder %v60, inf
    %v69 = vsel %vm68, %v60, %v67
    %vm70 = vcmp.eq.f32.partialorder %v60, 0.0
    %v71 = vand.u32 %v60, 2147483648
    %v72 = vsel %vm70, %v71, %v69
    %v73 = vand.u32 2147483647, %v46
    %v74 = vand.u32 2147483647, %v72
    %v75 = vmin.f32 %v73, %v74
    %v76 = vmax.f32 %v73, %v74
    %v77 = vrcp.pop %v76
    %v78 = vmul.f32 %v76, %v77
    %v79 = vsub.f32 1.0, %v78
    %v80 = vmul.f32 %v77, %v79
    %v81 = vadd.f32 %v77, %v80
    %vm82 = vweird.f32 %v76
    %vm83 = vweird.f32 %v77
    %vm84 = vmor %vm82, %vm83
    %v85 = vsel %vm84, %v77, %v81
    %v86 = vand.u32 2147483647, %v76
    %vm87 = vcmp.eq.f32.partialorder %v86, 8.507059e+37
    %v88 = vand.u32 %v76, 2147483648
    %v89 = vor.u32 1.1754944e-38, %v88
    %v90 = vsel %vm87, %v89, %v85
    %v91 = vmul.f32 %v75, %v90
    %v92 = vmul.f32 %v91, %v91
    %v93 = vmul.f32 0.002785687, %v92
    %v94 = vadd.f32 %v93, -0.015866
    %v95 = vmul.f32 %v94, %v92
    %v96 = vadd.f32 %v95, 0.04247222
    %v97 = vmul.f32 %v96, %v92
    %v98 = vadd.f32 %v97, -0.074975304
    %v99 = vmul.f32 %v98, %v92
    %v100 = vadd.f32 %v99, 0.1064488
    %v101 = vmul.f32 %v100, %v92
    %v102 = vadd.f32 %v101, -0.14207031
    %v103 = vmul.f32 %v102, %v92
    %v104 = vadd.f32 %v103, 0.19993454
    %v105 = vmul.f32 %v104, %v92
    %v106 = vadd.f32 %v105, -0.33333147
    %v107 = vmul.f32 %v106, %v92
    %v108 = vmul.f32 %v107, %v91
    %v109 = vadd.f32 %v108, %v91
    %vm110 = vcmp.gt.f32.partialorder %v74, %v73
    %v111 = vsub.f32 1.5707964, %v109
    %v112 = vsel %vm110, %v111, %v109
    %vm113 = vcmp.lt.f32.partialorder %v46, 0.0
    %v114 = vsub.f32 3.1415927, %v112
    %v115 = vsel %vm113, %v114, %v112
    %vm116 = vcmp.lt.s32.totalorder %v46, 0
    %v117 = vsel %vm116, 3.1415927, 0.0
    %vm118 = vcmp.eq.f32.partialorder %v72, 0.0
    %v119 = vsel %vm118, %v117, %v115
    %vm120 = vcmp.ne.f32.partialorder %v46, %v46
    %vm121 = vcmp.ne.f32.partialorder %v72, %v72
    %vm122 = vmor %vm120, %vm121
    %v123 = vsel %vm122, nan, %v119
    %vm124 = vcmp.lt.f32.partialorder %v46, 0.0
    %v125 = vsel %vm124, 2.3561945, 0.7853982
    %vm126 = vcmp.eq.s32.totalorder %v73, inf
    %vm127 = vcmp.eq.s32.totalorder %v74, inf
    %vm128 = vmand %vm126, %vm127
    %v129 = vsel %vm128, %v125, %v123
    %v130 = vand.u32 2147483647, %v129
    %v131 = vand.u32 %v72, 2147483648
    %v132 = vor.u32 %v130, %v131
    %v133 = vld [vmem:[#allocation2] sm:$0xff]
    %v134 = vadd.f32 %v132, 0.0
    %v135 = vadd.f32 %v133, %v134
    %136 = vst [vmem:[#allocation2] sm:$0xff] %v135
    // Predicated region
    $region10: #{_loss_impl.1} parent=1 // pred_check
      %p137 = pneg %p26
    $region11: #{_loss_impl.1} parent=1 // pred_check_branch
      %139 = sbr.rel (%p137) target = $region13
    $region12: #{_loss_impl.1} parent=1 // pred_region
      %v140 = vld [vmem:[#allocation2] sm:$0xff]
      %141 = vadd.xlane.f32.xlu0 %v140
      %v142 = vpop.xlane.xlu0 %141
      %v143 = vrot.slane %v142, 4
      %v144 = vadd.f32 %v142, %v143
      %v145 = vrot.slane %v144, 2
      %v146 = vadd.f32 %v144, %v145
      %v147 = vrot.slane %v146, 1
      %v148 = vadd.f32 %v146, %v147
      %s149 = vtos %v148
      %s150 = scalar_lea.smem [#allocation3], 0
      %151 = sst [smem:[%s150]] %s149
    $region13: #{_loss_impl.1} parent=1 // pred_fallthru
      _
    // Predicated region
    $region14: #{_loss_impl.1} parent=1 // pred_check
      _
    $region15: #{_loss_impl.1} parent=1 // pred_check_branch
      %153 = sbr.rel (0) target = $region17
    $region16: #{_loss_impl.1} parent=1 // pred_region
      %155 = vsyncadd [#allocation4], 0
      %s157 = sshll.u32 %s1, 4
      %s158 = int_to_ptr.hbm [resolvable:$true] %s157
      %160 = dma.smem_to_hbm [#allocation3], 16, %s158, [#allocation4]
    $region17: #{_loss_impl.1} parent=1 // pred_fallthru
      _
    // Predicated region
    $region18: #{_loss_impl.1} parent=1 // pred_check
      _
    $region19: #{_loss_impl.1} parent=1 // pred_check_branch
      %162 = sbr.rel (0) target = $region21
    $region20: #{_loss_impl.1} parent=1 // pred_region
      %164 = dma.done [#allocation4], 16
    $region21: #{_loss_impl.1} parent=1 // pred_fallthru
      _
    %165 = sfence
    %166 = vsyncpa [#allocation4], 1

</llo_original>
